<compile_context>
chip_gen: v7x
topology: tpu7x:2x2x1
jax: 0.10.0
libtpu: 0.0.40
codegen_flags: <defaults>
</compile_context>

<pallas_src>
import numpy as np
import jax
import jax.numpy as jnp
from jax.experimental import pallas as pl
from jax.experimental.pallas import tpu as pltpu


def _sparsemax_kernel(x_ref, o_ref):
    # x_ref / o_ref: (N, TM) tile.  Sparsemax along axis 0 (sublanes);
    # independent rows live on the lane axis (dense vregs, unmasked stores).
    z = x_ref[...].astype(jnp.float32)
    z = z - jnp.max(z, axis=0, keepdims=True)          # shift by per-row max

    zj = z[:, None, :]                                  # (N, 1, TM): value z_j
    zi = z[None, :, :]                                  # (1, N, TM): pivot z_i
    mask = zj >= zi                                     # (N, N, TM) bool

    # Reduce over the leading (plane) axis -> plain VALU adds, no XLU traffic
    # on the big temp.  Keep the mask boolean; select instead of convert+mul.
    r = jnp.sum(jnp.where(mask, 1.0, 0.0), axis=0)      # (N, TM) rank of z_i
    s = jnp.sum(jnp.where(mask, zj, 0.0), axis=0)       # (N, TM) sum of z_j >= z_i

    support = (1.0 + r * z) > s                         # (N, TM) bool, in-support
    k = jnp.max(jnp.where(support, r, 0.0), axis=0, keepdims=True)   # >= 1 always
    zs_sum = jnp.sum(jnp.where(support, z, 0.0), axis=0, keepdims=True)
    tau = (zs_sum - 1.0) / k

    o_ref[...] = jnp.maximum(z - tau, 0.0).astype(o_ref.dtype)


def _choose_lane_tile(m, n):
    """Lane tile TM (multiple of 128) sized against a conservative VMEM budget."""
    # Per-lane f32 bytes: (N,N) pairwise temp + 2x double-buffered (N,) in/out.
    lane_budget = 8 * 1024 * 1024
    per_lane_bytes = (n * n + 4 * n) * 4
    tm = (lane_budget // per_lane_bytes) // 128 * 128
    tm = int(max(128, min(tm, 1024)))
    m_lanes = ((m + 127) // 128) * 128
    if m_lanes >= 2 * 128:
        # Keep the grid at >= 2 steps so v7x megacore can shard the work.
        tm = min(tm, max(128, (m_lanes // 2) // 128 * 128))
    tm = min(tm, m_lanes)
    return tm


def sparsemax(x, dim=-1):
    """Sparsemax along `dim` (default -1), matching the PyTorch module."""
    assert dim in (-1, x.ndim - 1), "kernel implements the default dim=-1 case"
    orig_shape = x.shape
    n = orig_shape[-1]
    m = int(np.prod(orig_shape[:-1]))

    # Lane-dense slab: rows (independent sparsemaxes) on lanes, logits on sublanes.
    x2 = x.reshape(m, n).T                              # (N, M)

    tm = _choose_lane_tile(m, n)
    m_padded = pl.cdiv(m, tm) * tm
    if m_padded != m:
        x2 = jnp.pad(x2, ((0, 0), (0, m_padded - m)))   # zero rows are harmless
    grid = (m_padded // tm,)

    # VMEM limit: modeled per-step use (pairwise temp + double-buffered tiles)
    # with generous margin, clamped to stay safe on v5e (16 MiB scoped default)
    # and v7x (64 MiB physical per TC).
    est_bytes = (n * n * tm + 4 * n * tm) * 4
    vmem_limit = int(min(max(4 * est_bytes, 16 << 20), 48 << 20))

    out = pl.pallas_call(
        _sparsemax_kernel,
        out_shape=jax.ShapeDtypeStruct((n, m_padded), x.dtype),
        grid_spec=pltpu.PrefetchScalarGridSpec(
            num_scalar_prefetch=0,
            grid=grid,
            in_specs=[pl.BlockSpec((n, tm), lambda i: (0, i))],
            out_specs=pl.BlockSpec((n, tm), lambda i: (0, i)),
        ),
        compiler_params=pltpu.CompilerParams(
            dimension_semantics=("parallel",),
            vmem_limit_bytes=vmem_limit),
    )(x2)

    out = out[:, :m].T                                  # back to (M, N)
    return out.reshape(orig_shape)


def _sparsemax_ref(x):
    """Pure-JAX reference mirroring the PyTorch sort/cumsum algorithm."""
    z = x - jnp.max(x, axis=-1, keepdims=True)
    zs = -jnp.sort(-z, axis=-1)
    n = x.shape[-1]
    rng = jnp.arange(1, n + 1, dtype=x.dtype)
    bound = 1.0 + rng * zs
    cs = jnp.cumsum(zs, axis=-1)
    is_gt = (bound > cs).astype(x.dtype)
    k = jnp.max(is_gt * rng, axis=-1, keepdims=True)
    taus = (jnp.sum(is_gt * zs, axis=-1, keepdims=True) - 1.0) / k
    return jnp.maximum(z - taus, 0.0)


if __name__ == "__main__":
    key = jax.random.PRNGKey(0)
    x = jax.random.normal(key, (2, 4, 16, 16), dtype=jnp.float32)

    out = sparsemax(x)
    out = jax.block_until_ready(out)

    ref = _sparsemax_ref(x)
    np.testing.assert_allclose(np.asarray(out), np.asarray(ref),
                               rtol=1e-5, atol=1e-5)
    # sparsemax rows must sum to 1
    np.testing.assert_allclose(np.asarray(out).sum(-1),
                               np.ones(x.shape[:-1]), rtol=1e-5, atol=1e-5)
    print("KERNEL_OK")
</pallas_src>

<mosaic_0001>
module attributes {stable_mosaic.version = 11 : i64} {
  func.func @_sparsemax_kernel(%arg0: i32, %arg1: memref<16x128xf32, #tpu.memory_space<vmem>>, %arg2: memref<16x128xf32, #tpu.memory_space<vmem>>) attributes {dimension_semantics = [#tpu.dimension_semantics<parallel>], iteration_bounds = array<i64: 1>, scalar_prefetch = 0 : i64, scratch_operands = 0 : i64, tpu.core_type = #tpu.core_type<tc>, window_params = [{transform_indices = @transform_0, window_bounds = array<i64: 16, 128>}, {transform_indices = @transform_1, window_bounds = array<i64: 16, 128>}]} {
    %c0 = arith.constant 0 : index
    %c0_0 = arith.constant 0 : index
    %0 = vector.load %arg1[%c0, %c0_0] : memref<16x128xf32, #tpu.memory_space<vmem>>, vector<16x128xf32>
    %cst = arith.constant dense<0xFF800000> : vector<128xf32>
    %1 = vector.multi_reduction <maximumf>, %0, %cst [0] : vector<16x128xf32> to vector<128xf32>
    %2 = vector.shape_cast %1 : vector<128xf32> to vector<1x128xf32>
    %3 = vector.broadcast %2 : vector<1x128xf32> to vector<16x128xf32>
    %4 = arith.subf %0, %3 : vector<16x128xf32>
    %5 = vector.shape_cast %4 : vector<16x128xf32> to vector<16x1x128xf32>
    %6 = vector.shape_cast %4 : vector<16x128xf32> to vector<1x16x128xf32>
    %7 = vector.broadcast %5 : vector<16x1x128xf32> to vector<16x16x128xf32>
    %8 = vector.broadcast %6 : vector<1x16x128xf32> to vector<16x16x128xf32>
    %9 = arith.cmpf oge, %7, %8 : vector<16x16x128xf32>
    %cst_1 = arith.constant 1.000000e+00 : f32
    %cst_2 = arith.constant 0.000000e+00 : f32
    %10 = vector.broadcast %cst_1 : f32 to vector<16x16x128xf32>
    %11 = vector.broadcast %cst_2 : f32 to vector<16x16x128xf32>
    %12 = arith.select %9, %10, %11 : vector<16x16x128xi1>, vector<16x16x128xf32>
    %cst_3 = arith.constant dense<0.000000e+00> : vector<16x128xf32>
    %13 = vector.multi_reduction <add>, %12, %cst_3 [0] : vector<16x16x128xf32> to vector<16x128xf32>
    %cst_4 = arith.constant 0.000000e+00 : f32
    %14 = vector.shape_cast %5 : vector<16x1x128xf32> to vector<16x1x128xf32>
    %15 = vector.broadcast %14 : vector<16x1x128xf32> to vector<16x16x128xf32>
    %16 = vector.broadcast %cst_4 : f32 to vector<16x16x128xf32>
    %17 = arith.select %9, %15, %16 : vector<16x16x128xi1>, vector<16x16x128xf32>
    %cst_5 = arith.constant dense<0.000000e+00> : vector<16x128xf32>
    %18 = vector.multi_reduction <add>, %17, %cst_5 [0] : vector<16x16x128xf32> to vector<16x128xf32>
    %19 = arith.mulf %13, %4 : vector<16x128xf32>
    %cst_6 = arith.constant 1.000000e+00 : f32
    %20 = vector.broadcast %cst_6 : f32 to vector<16x128xf32>
    %21 = arith.addf %20, %19 : vector<16x128xf32>
    %22 = arith.cmpf ogt, %21, %18 : vector<16x128xf32>
    %cst_7 = arith.constant 0.000000e+00 : f32
    %23 = vector.broadcast %cst_7 : f32 to vector<16x128xf32>
    %24 = arith.select %22, %13, %23 : vector<16x128xi1>, vector<16x128xf32>
    %cst_8 = arith.constant dense<0xFF800000> : vector<128xf32>
    %25 = vector.multi_reduction <maximumf>, %24, %cst_8 [0] : vector<16x128xf32> to vector<128xf32>
    %26 = vector.shape_cast %25 : vector<128xf32> to vector<1x128xf32>
    %cst_9 = arith.constant 0.000000e+00 : f32
    %27 = vector.broadcast %cst_9 : f32 to vector<16x128xf32>
    %28 = arith.select %22, %4, %27 : vector<16x128xi1>, vector<16x128xf32>
    %cst_10 = arith.constant dense<0.000000e+00> : vector<128xf32>
    %29 = vector.multi_reduction <add>, %28, %cst_10 [0] : vector<16x128xf32> to vector<128xf32>
    %30 = vector.shape_cast %29 : vector<128xf32> to vector<1x128xf32>
    %cst_11 = arith.constant 1.000000e+00 : f32
    %31 = vector.broadcast %cst_11 : f32 to vector<1x128xf32>
    %32 = arith.subf %30, %31 : vector<1x128xf32>
    %33 = arith.divf %32, %26 : vector<1x128xf32>
    %34 = vector.broadcast %33 : vector<1x128xf32> to vector<16x128xf32>
    %35 = arith.subf %4, %34 : vector<16x128xf32>
    %cst_12 = arith.constant 0.000000e+00 : f32
    %36 = vector.broadcast %cst_12 : f32 to vector<16x128xf32>
    %37 = arith.maximumf %35, %36 : vector<16x128xf32>
    %c0_13 = arith.constant 0 : index
    %c0_14 = arith.constant 0 : index
    %38 = vector.load %arg2[%c0_13, %c0_14] : memref<16x128xf32, #tpu.memory_space<vmem>>, vector<16x128xf32>
    tpu.vector_store %arg2[%c0_13, %c0_14], %37 {strides = array<i32>} : memref<16x128xf32, #tpu.memory_space<vmem>>, vector<16x128xf32>,
    return
  }
  func.func @transform_0(%arg0: i32) -> (i32, i32) {
    %c0_i32 = arith.constant 0 : i32
    %c0_i32_0 = arith.constant 0 : i32
    return %c0_i32, %arg0 : i32, i32
  }
  func.func @transform_1(%arg0: i32) -> (i32, i32) {
    %c0_i32 = arith.constant 0 : i32
    %c0_i32_0 = arith.constant 0 : i32
    return %c0_i32, %arg0 : i32, i32
  }
}

</mosaic_0001>

<llo_original>
// kernel: tpu_custom_call.1
$region0: #{tpu_custom_call.1}
  #allocation0 [shape = 'u32[]', space=smem, size = 0x4, offset = 0x4, fixed_abs, tag = 'smem constant byte address 0x4 - core index']
  #allocation1 [shape = 'u32[144,128]{1,0:T(1,128)}', space=vmem, size = 0x12000, scoped, tag = 'internal scratch']
  %s0 = inlined_call_operand.hbm [shape: f32[16,128], index: 0, kind: input, shape index: {}]
  %s1 = inlined_call_operand.hbm [shape: f32[16,128], index: 1, kind: output, shape index: {}]
  %s2 = sld [smem:[#allocation0]]
  $region18: #{tpu_custom_call.1} parent=0
    _
  %s4 = ssub.s32 1, %s2
  %s5 = scalar_select 0, %s4, %s2
  $region1: #{tpu_custom_call.1} parent=0
    #allocation2 [shape = 'u8[8192]{0}', space=vmem, size = 0x2000, scoped, tag = 'input window, operand 0, single buffered']
    #allocation3 [shape = 's32[1]{0}', space=sflag, size = 0x4, scoped, tag = 'scoped memory for tpu_custom_call.1']
    #allocation4 [shape = 's32[1]{0}', space=sflag, size = 0x4, scoped, tag = 'scoped memory for tpu_custom_call.1']
    #allocation5 [shape = 'u8[8192]{0}', space=vmem, size = 0x2000, scoped, tag = 'output window, operand 0, single buffered']
    %6 = vsyncpa [#allocation3], 0
    %7 = vsyncpa [#allocation4], 0
    // Predicated region
    $region2: #{tpu_custom_call.1} parent=1 // pred_check
      _
    $region3: #{tpu_custom_call.1} parent=1 // pred_check_branch
      %9 = sbr.rel (0) target = $region5
    $region4: #{tpu_custom_call.1} parent=1 // pred_region
      %s11 = ssub.s32 256, 256
      %12 = vsyncadd [#allocation3], %s11
      %s13 = sshll.u32 [#allocation2], 4
      %s14 = int_to_ptr.vmem [resolvable:$true] %s13
      %19 = dma.hbm_to_vmem [thread:$0]  %s0, 256, %s14, [#allocation3], 128, 128, 8
    $region5: #{tpu_custom_call.1} parent=1 // pred_fallthru
      _
    // Predicated region
    $region6: #{tpu_custom_call.1} parent=1 // pred_check
      _
    $region7: #{tpu_custom_call.1} parent=1 // pred_check_branch
      %21 = sbr.rel (0) target = $region9
    $region8: #{tpu_custom_call.1} parent=1 // pred_region
      %22 = dma.done [#allocation3], 256
    $region9: #{tpu_custom_call.1} parent=1 // pred_fallthru
      _
    %v23 = vld [vmem:[#allocation2] sm:$0xff]
    %v24 = vld [vmem:[#allocation2 + $0x8] sm:$0xff]
    %v25 = vmax.f32 %v23, %v24
    %v26 = vrot.slane %v25, 4
    %v27 = vmax.f32 %v25, %v26
    %v28 = vrot.slane %v27, 2
    %v29 = vmax.f32 %v27, %v28
    %v30 = vrot.slane %v29, 1
    %v31 = vmax.f32 %v29, %v30
    %v32 = vsub.f32 %v23, %v31
    %v33 = vsub.f32 %v24, %v31
    %v36 = vcombine.high %v32, %v32
    %v38 = vunpack.c.l.s4 1966171168
    %v39 = vunpack.c.0.s8 %v38
    %v40 = vlaneseq
    %v41 = vshrl.u32 %v40, 7
    %v42 = vsub.s32 %v39, %v41
    %v43 = vrot.slane %v32, %v42
    %v45 = vunpack.c.l.s4 1966171168
    %v46 = vunpack.c.0.s8 %v45
    %v47 = vlaneseq
    %v48 = vshrl.u32 %v47, 7
    %v49 = vsub.s32 %v46, %v48
    %v50 = vrot.slane %v36, %v49
    %v51 = vcombine.high %v43, %v43
    %v52 = vcombine.high %v50, %v50
    %v54 = vunpack.c.l.s4 1966171168
    %v55 = vunpack.c.0.s8 %v54
    %v56 = vlaneseq
    %v57 = vshrl.u32 %v56, 7
    %v58 = vsub.s32 %v55, %v57
    %v59 = vrot.slane %v43, %v58
    %v61 = vunpack.c.l.s4 1966171168
    %v62 = vunpack.c.0.s8 %v61
    %v63 = vlaneseq
    %v64 = vshrl.u32 %v63, 7
    %v65 = vsub.s32 %v62, %v64
    %v66 = vrot.slane %v50, %v65
    %v68 = vunpack.c.l.s4 1966171168
    %v69 = vunpack.c.0.s8 %v68
    %v70 = vlaneseq
    %v71 = vshrl.u32 %v70, 7
    %v72 = vsub.s32 %v69, %v71
    %v73 = vrot.slane %v51, %v72
    %v75 = vunpack.c.l.s4 1966171168
    %v76 = vunpack.c.0.s8 %v75
    %v77 = vlaneseq
    %v78 = vshrl.u32 %v77, 7
    %v79 = vsub.s32 %v76, %v78
    %v80 = vrot.slane %v52, %v79
    %v81 = vcombine.high %v59, %v59
    %v82 = vcombine.high %v66, %v66
    %v83 = vcombine.high %v73, %v73
    %v84 = vcombine.high %v80, %v80
    %v85 = vcombine.high %v33, %v33
    %v87 = vunpack.c.l.s4 1966171168
    %v88 = vunpack.c.0.s8 %v87
    %v89 = vlaneseq
    %v90 = vshrl.u32 %v89, 7
    %v91 = vsub.s32 %v88, %v90
    %v92 = vrot.slane %v33, %v91
    %v94 = vunpack.c.l.s4 1966171168
    %v95 = vunpack.c.0.s8 %v94
    %v96 = vlaneseq
    %v97 = vshrl.u32 %v96, 7
    %v98 = vsub.s32 %v95, %v97
    %v99 = vrot.slane %v85, %v98
    %v100 = vcombine.high %v92, %v92
    %v101 = vcombine.high %v99, %v99
    %v103 = vunpack.c.l.s4 1966171168
    %v104 = vunpack.c.0.s8 %v103
    %v105 = vlaneseq
    %v106 = vshrl.u32 %v105, 7
    %v107 = vsub.s32 %v104, %v106
    %v108 = vrot.slane %v92, %v107
    %v110 = vunpack.c.l.s4 1966171168
    %v111 = vunpack.c.0.s8 %v110
    %v112 = vlaneseq
    %v113 = vshrl.u32 %v112, 7
    %v114 = vsub.s32 %v111, %v113
    %v115 = vrot.slane %v99, %v114
    %v117 = vunpack.c.l.s4 1966171168
    %v118 = vunpack.c.0.s8 %v117
    %v119 = vlaneseq
    %v120 = vshrl.u32 %v119, 7
    %v121 = vsub.s32 %v118, %v120
    %v122 = vrot.slane %v100, %v121
    %v124 = vunpack.c.l.s4 1966171168
    %v125 = vunpack.c.0.s8 %v124
    %v126 = vlaneseq
    %v127 = vshrl.u32 %v126, 7
    %v128 = vsub.s32 %v125, %v127
    %v129 = vrot.slane %v101, %v128
    %v130 = vcombine.high %v108, %v108
    %v131 = vcombine.high %v115, %v115
    %v132 = vcombine.high %v122, %v122
    %v133 = vcombine.high %v129, %v129
    %v134 = vlaneseq
    %v135 = vshrl.u32 %v134, 7
    %v136 = vsub.s32 0, %v135
    %v137 = vrot.slane %v59, %v136
    %v138 = vlaneseq
    %v139 = vshrl.u32 %v138, 7
    %v140 = vsub.s32 0, %v139
    %v141 = vrot.slane %v73, %v140
    %v142 = vlaneseq
    %v143 = vshrl.u32 %v142, 7
    %v144 = vsub.s32 0, %v143
    %v145 = vrot.slane %v81, %v144
    %v146 = vlaneseq
    %v147 = vshrl.u32 %v146, 7
    %v148 = vsub.s32 0, %v147
    %v149 = vrot.slane %v83, %v148
    %v150 = vlaneseq
    %v151 = vshrl.u32 %v150, 7
    %v152 = vsub.s32 0, %v151
    %v153 = vrot.slane %v66, %v152
    %v154 = vlaneseq
    %v155 = vshrl.u32 %v154, 7
    %v156 = vsub.s32 0, %v155
    %v157 = vrot.slane %v80, %v156
    %v158 = vlaneseq
    %v159 = vshrl.u32 %v158, 7
    %v160 = vsub.s32 0, %v159
    %v161 = vrot.slane %v82, %v160
    %v162 = vlaneseq
    %v163 = vshrl.u32 %v162, 7
    %v164 = vsub.s32 0, %v163
    %v165 = vrot.slane %v84, %v164
    %v166 = vlaneseq
    %v167 = vshrl.u32 %v166, 7
    %v168 = vsub.s32 0, %v167
    %v169 = vrot.slane %v108, %v168
    %v170 = vlaneseq
    %v171 = vshrl.u32 %v170, 7
    %v172 = vsub.s32 0, %v171
    %v173 = vrot.slane %v122, %v172
    %v174 = vlaneseq
    %v175 = vshrl.u32 %v174, 7
    %v176 = vsub.s32 0, %v175
    %v177 = vrot.slane %v130, %v176
    %v178 = vlaneseq
    %v179 = vshrl.u32 %v178, 7
    %v180 = vsub.s32 0, %v179
    %v181 = vrot.slane %v132, %v180
    %v182 = vlaneseq
    %v183 = vshrl.u32 %v182, 7
    %v184 = vsub.s32 0, %v183
    %v185 = vrot.slane %v115, %v184
    %v186 = vlaneseq
    %v187 = vshrl.u32 %v186, 7
    %v188 = vsub.s32 0, %v187
    %v189 = vrot.slane %v129, %v188
    %v190 = vlaneseq
    %v191 = vshrl.u32 %v190, 7
    %v192 = vsub.s32 0, %v191
    %v193 = vrot.slane %v131, %v192
    %v194 = vlaneseq
    %v195 = vshrl.u32 %v194, 7
    %v196 = vsub.s32 0, %v195
    %v197 = vrot.slane %v133, %v196
    %vm214 = vcmp.ge.f32.partialorder %v137, %v32
    %vm215 = vcmp.ge.f32.partialorder %v137, %v33
    %vm216 = vcmp.ge.f32.partialorder %v141, %v32
    %vm217 = vcmp.ge.f32.partialorder %v141, %v33
    %vm218 = vcmp.ge.f32.partialorder %v145, %v32
    %vm219 = vcmp.ge.f32.partialorder %v145, %v33
    %vm220 = vcmp.ge.f32.partialorder %v149, %v32
    %vm221 = vcmp.ge.f32.partialorder %v149, %v33
    %vm222 = vcmp.ge.f32.partialorder %v153, %v32
    %vm223 = vcmp.ge.f32.partialorder %v153, %v33
    %vm224 = vcmp.ge.f32.partialorder %v157, %v32
    %vm225 = vcmp.ge.f32.partialorder %v157, %v33
    %vm226 = vcmp.ge.f32.partialorder %v161, %v32
    %vm227 = vcmp.ge.f32.partialorder %v161, %v33
    %vm228 = vcmp.ge.f32.partialorder %v165, %v32
    %vm229 = vcmp.ge.f32.partialorder %v165, %v33
    %vm230 = vcmp.ge.f32.partialorder %v169, %v32
    %vm231 = vcmp.ge.f32.partialorder %v169, %v33
    %vm232 = vcmp.ge.f32.partialorder %v173, %v32
    %vm233 = vcmp.ge.f32.partialorder %v173, %v33
    %vm234 = vcmp.ge.f32.partialorder %v177, %v32
    %vm235 = vcmp.ge.f32.partialorder %v177, %v33
    %vm236 = vcmp.ge.f32.partialorder %v181, %v32
    %vm237 = vcmp.ge.f32.partialorder %v181, %v33
    %vm238 = vcmp.ge.f32.partialorder %v185, %v32
    %vm239 = vcmp.ge.f32.partialorder %v185, %v33
    %vm240 = vcmp.ge.f32.partialorder %v189, %v32
    %vm241 = vcmp.ge.f32.partialorder %v189, %v33
    %vm242 = vcmp.ge.f32.partialorder %v193, %v32
    %vm243 = vcmp.ge.f32.partialorder %v193, %v33
    %vm244 = vcmp.ge.f32.partialorder %v197, %v32
    %vm245 = vcmp.ge.f32.partialorder %v197, %v33
    %v246 = vsel %vm214, 1.0, 0.0
    %v247 = vsel %vm215, 1.0, 0.0
    %v248 = vsel %vm216, 1.0, 0.0
    %v249 = vsel %vm217, 1.0, 0.0
    %v250 = vsel %vm218, 1.0, 0.0
    %v251 = vsel %vm219, 1.0, 0.0
    %v252 = vsel %vm220, 1.0, 0.0
    %v253 = vsel %vm221, 1.0, 0.0
    %v254 = vsel %vm222, 1.0, 0.0
    %v255 = vsel %vm223, 1.0, 0.0
    %v256 = vsel %vm224, 1.0, 0.0
    %v257 = vsel %vm225, 1.0, 0.0
    %v258 = vsel %vm226, 1.0, 0.0
    %v259 = vsel %vm227, 1.0, 0.0
    %v260 = vsel %vm228, 1.0, 0.0
    %v261 = vsel %vm229, 1.0, 0.0
    %v262 = vsel %vm230, 1.0, 0.0
    %v263 = vsel %vm231, 1.0, 0.0
    %v264 = vsel %vm232, 1.0, 0.0
    %v265 = vsel %vm233, 1.0, 0.0
    %v266 = vsel %vm234, 1.0, 0.0
    %v267 = vsel %vm235, 1.0, 0.0
    %v268 = vsel %vm236, 1.0, 0.0
    %v269 = vsel %vm237, 1.0, 0.0
    %v270 = vsel %vm238, 1.0, 0.0
    %v271 = vsel %vm239, 1.0, 0.0
    %v272 = vsel %vm240, 1.0, 0.0
    %v273 = vsel %vm241, 1.0, 0.0
    %v274 = vsel %vm242, 1.0, 0.0
    %v275 = vsel %vm243, 1.0, 0.0
    %v276 = vsel %vm244, 1.0, 0.0
    %v277 = vsel %vm245, 1.0, 0.0
    %v278 = vadd.f32 %v246, %v248
    %v279 = vadd.f32 %v278, %v250
    %v280 = vadd.f32 %v279, %v252
    %v281 = vadd.f32 %v280, %v254
    %v282 = vadd.f32 %v281, %v256
    %v283 = vadd.f32 %v282, %v258
    %v284 = vadd.f32 %v283, %v260
    %v285 = vadd.f32 %v284, %v262
    %v286 = vadd.f32 %v285, %v264
    %v287 = vadd.f32 %v286, %v266
    %v288 = vadd.f32 %v287, %v268
    %v289 = vadd.f32 %v288, %v270
    %v290 = vadd.f32 %v289, %v272
    %v291 = vadd.f32 %v290, %v274
    %v292 = vadd.f32 %v291, %v276
    %v293 = vadd.f32 %v247, %v249
    %v294 = vadd.f32 %v293, %v251
    %v295 = vadd.f32 %v294, %v253
    %v296 = vadd.f32 %v295, %v255
    %v297 = vadd.f32 %v296, %v257
    %v298 = vadd.f32 %v297, %v259
    %v299 = vadd.f32 %v298, %v261
    %v300 = vadd.f32 %v299, %v263
    %v301 = vadd.f32 %v300, %v265
    %v302 = vadd.f32 %v301, %v267
    %v303 = vadd.f32 %v302, %v269
    %v304 = vadd.f32 %v303, %v271
    %v305 = vadd.f32 %v304, %v273
    %v306 = vadd.f32 %v305, %v275
    %v307 = vadd.f32 %v306, %v277
    %v308 = vsel %vm214, %v137, 0.0
    %v309 = vsel %vm215, %v137, 0.0
    %v310 = vsel %vm216, %v141, 0.0
    %v311 = vsel %vm217, %v141, 0.0
    %v312 = vsel %vm218, %v145, 0.0
    %v313 = vsel %vm219, %v145, 0.0
    %v314 = vsel %vm220, %v149, 0.0
    %v315 = vsel %vm221, %v149, 0.0
    %v316 = vsel %vm222, %v153, 0.0
    %v317 = vsel %vm223, %v153, 0.0
    %v318 = vsel %vm224, %v157, 0.0
    %v319 = vsel %vm225, %v157, 0.0
    %v320 = vsel %vm226, %v161, 0.0
    %v321 = vsel %vm227, %v161, 0.0
    %v322 = vsel %vm228, %v165, 0.0
    %v323 = vsel %vm229, %v165, 0.0
    %v324 = vsel %vm230, %v169, 0.0
    %v325 = vsel %vm231, %v169, 0.0
    %v326 = vsel %vm232, %v173, 0.0
    %v327 = vsel %vm233, %v173, 0.0
    %v328 = vsel %vm234, %v177, 0.0
    %v329 = vsel %vm235, %v177, 0.0
    %v330 = vsel %vm236, %v181, 0.0
    %v331 = vsel %vm237, %v181, 0.0
    %v332 = vsel %vm238, %v185, 0.0
    %v333 = vsel %vm239, %v185, 0.0
    %v334 = vsel %vm240, %v189, 0.0
    %v335 = vsel %vm241, %v189, 0.0
    %v336 = vsel %vm242, %v193, 0.0
    %v337 = vsel %vm243, %v193, 0.0
    %v338 = vsel %vm244, %v197, 0.0
    %v339 = vsel %vm245, %v197, 0.0
    %v340 = vadd.f32 %v308, %v310
    %v341 = vadd.f32 %v340, %v312
    %v342 = vadd.f32 %v341, %v314
    %v343 = vadd.f32 %v342, %v316
    %v344 = vadd.f32 %v343, %v318
    %v345 = vadd.f32 %v344, %v320
    %v346 = vadd.f32 %v345, %v322
    %v347 = vadd.f32 %v346, %v324
    %v348 = vadd.f32 %v347, %v326
    %v349 = vadd.f32 %v348, %v328
    %v350 = vadd.f32 %v349, %v330
    %v351 = vadd.f32 %v350, %v332
    %v352 = vadd.f32 %v351, %v334
    %v353 = vadd.f32 %v352, %v336
    %v354 = vadd.f32 %v353, %v338
    %v355 = vadd.f32 %v309, %v311
    %v356 = vadd.f32 %v355, %v313
    %v357 = vadd.f32 %v356, %v315
    %v358 = vadd.f32 %v357, %v317
    %v359 = vadd.f32 %v358, %v319
    %v360 = vadd.f32 %v359, %v321
    %v361 = vadd.f32 %v360, %v323
    %v362 = vadd.f32 %v361, %v325
    %v363 = vadd.f32 %v362, %v327
    %v364 = vadd.f32 %v363, %v329
    %v365 = vadd.f32 %v364, %v331
    %v366 = vadd.f32 %v365, %v333
    %v367 = vadd.f32 %v366, %v335
    %v368 = vadd.f32 %v367, %v337
    %v369 = vadd.f32 %v368, %v339
    %v370 = vmul.f32 %v292, %v32
    %v371 = vmul.f32 %v307, %v33
    %v372 = vadd.f32 %v370, 1.0
    %v373 = vadd.f32 %v371, 1.0
    %vm374 = vcmp.gt.f32.partialorder %v372, %v354
    %vm375 = vcmp.gt.f32.partialorder %v373, %v369
    %v376 = vsel %vm374, %v292, 0.0
    %v377 = vsel %vm375, %v307, 0.0
    %v378 = vmax.f32 %v376, %v377
    %v379 = vrot.slane %v378, 4
    %v380 = vmax.f32 %v378, %v379
    %v381 = vrot.slane %v380, 2
    %v382 = vmax.f32 %v380, %v381
    %v383 = vrot.slane %v382, 1
    %v384 = vmax.f32 %v382, %v383
    %v385 = vsel %vm374, %v32, 0.0
    %v386 = vsel %vm375, %v33, 0.0
    %v387 = vadd.f32 %v385, %v386
    %v388 = vrot.slane %v387, 4
    %v389 = vadd.f32 %v387, %v388
    %v390 = vrot.slane %v389, 2
    %v391 = vadd.f32 %v389, %v390
    %v392 = vrot.slane %v391, 1
    %v393 = vadd.f32 %v391, %v392
    %v394 = vsub.f32 %v393, 1.0
    %v395 = vrcp.pop %v384
    %v396 = vmul.f32 %v394, %v395
    %v397 = vsub.f32 %v32, %v396
    %v398 = vsub.f32 %v33, %v396
    %v399 = vmax.f32 %v397, 0.0
    %v400 = vmax.f32 %v398, 0.0
    %401 = vst [vmem:[#allocation5] sm:$0xff] %v399
    %402 = vst [vmem:[#allocation5 + $0x8] sm:$0xff] %v400
    // Predicated region
    $region10: #{tpu_custom_call.1} parent=1 // pred_check
      _
    $region11: #{tpu_custom_call.1} parent=1 // pred_check_branch
      %404 = sbr.rel (0) target = $region13
    $region12: #{tpu_custom_call.1} parent=1 // pred_region
      %s406 = ssub.s32 256, 256
      %407 = vsyncadd [#allocation4], %s406
      %s408 = sshll.u32 [#allocation5], 4
      %s409 = int_to_ptr.vmem [resolvable:$true] %s408
      %414 = dma.vmem_to_hbm [thread:$0]  %s409, 256, %s1, [#allocation4], 128, 128, 8
    $region13: #{tpu_custom_call.1} parent=1 // pred_fallthru
      _
    // Predicated region
    $region14: #{tpu_custom_call.1} parent=1 // pred_check
      _
    $region15: #{tpu_custom_call.1} parent=1 // pred_check_branch
      %416 = sbr.rel (0) target = $region17
    $region16: #{tpu_custom_call.1} parent=1 // pred_region
      %417 = dma.done [#allocation4], 256
    $region17: #{tpu_custom_call.1} parent=1 // pred_fallthru
      _
    %418 = vsyncpa [#allocation3], 1
    %419 = vsyncpa [#allocation4], 1

</llo_original>
